<compile_context>
chip_gen: v5e
topology: v5e:2x2
jax: 0.10.0
libtpu: 0.0.40
codegen_flags: <defaults>
</compile_context>

<pallas_src>
import jax
import jax.numpy as jnp
from jax import lax
from jax.experimental import pallas as pl
from jax.experimental.pallas import tpu as pltpu


# ----------------------------------------------------------------------------
# Fused kernel
# ----------------------------------------------------------------------------
def _make_fused_tcn_kernel(num_blocks, has_ds, k, T, bt, dilations, compute_dtype):
    """Builds the fully fused TCN forward kernel.

    Ref order: x (bt*T, C0),
    then per block [w1 (k,Cin,Cout), b1, w2 (k,Cout,Cout), b2, (wds, bds)],
    then fc_w, fc_b, out (1, bt, O), [h_scratch (bt*T, C_last) if bt > 1].
    """
    N = bt * T
    # Distinct non-zero causal shift amounts used by any conv tap (static).
    all_shifts = sorted({(k - 1 - j) * d for d in dilations for j in range(k)} - {0})

    def kernel(*refs):
        it = iter(refs)
        x_ref = next(it)
        blk_refs = []
        for i in range(num_blocks):
            n = 6 if has_ds[i] else 4
            blk_refs.append([next(it) for _ in range(n)])
        fcw_ref = next(it)
        fcb_ref = next(it)
        out_ref = next(it)
        h_scr = next(it, None)  # only present when bt > 1

        # --- causal masks, hoisted: one (N, 1) predicate per distinct shift ---
        row = lax.broadcasted_iota(jnp.int32, (N, 1), 0)
        if T & (T - 1) == 0:
            t_col = row & (T - 1)          # r mod T (T power of two)
        else:
            t_col = row % T
        masks = {s: (t_col >= s) for s in all_shifts if s < T}

        def shift(v, s):
            # out[r] = v[r - s] within each length-T batch segment, else 0.
            # roll is circular over the tile; the wrapped / cross-batch rows are
            # exactly the rows the mask zeroes out.
            if s == 0:
                return v
            if s >= T:
                return None                 # every row masked -> tap contributes 0
            rolled = pltpu.roll(v, s, axis=0)
            return jnp.where(masks[s], rolled, jnp.zeros_like(rolled))

        def conv_relu(v, w_ref, b_ref, d):
            # k accumulated per-tap matmuls: y = sum_j shift(v, s_j) @ w[j].
            # (Keep the concat-im2col form only when Cin % 128 == 0; here channel
            # counts are small/unaligned so the lane concat would be relayout.)
            acc = None
            for j in range(k):
                tap = shift(v, (k - 1 - j) * d)
                if tap is None:
                    continue
                y = jnp.dot(tap.astype(compute_dtype), w_ref[j],
                            preferred_element_type=jnp.float32)
                acc = y if acc is None else acc + y
            return jnp.maximum(acc + b_ref[...], 0.0)

        h = x_ref[...].astype(jnp.float32)          # (N, C0), activations stay f32
        for i in range(num_blocks):
            d = dilations[i]
            prs = blk_refs[i]
            x_in = h
            # conv1 -> chomp -> ReLU -> dropout (identity, eval mode)
            h = conv_relu(h, prs[0], prs[1], d)
            # conv2 -> chomp -> ReLU -> dropout (identity, eval mode)
            h = conv_relu(h, prs[2], prs[3], d)
            # residual (+ optional 1x1 downsample) + ReLU
            if has_ds[i]:
                res = (jnp.dot(x_in.astype(compute_dtype), prs[4][...],
                               preferred_element_type=jnp.float32) + prs[5][...])
            else:
                res = x_in
            h = jnp.maximum(h + res, 0.0)

        # Last timestep of each batch element, then FC.
        if bt == 1:
            h_last = h[T - 1:T, :]                               # (1, C_last)
        else:
            h_scr[...] = h
            h_last = h_scr[pl.ds(T - 1, bt, stride=T), :]        # (bt, C_last)
        out = (jnp.dot(h_last.astype(compute_dtype), fcw_ref[...],
                       preferred_element_type=jnp.float32) + fcb_ref[...])
        out_ref[...] = out.reshape((1,) + out.shape)

    return kernel


# ----------------------------------------------------------------------------
# Batch-tile picker
# ----------------------------------------------------------------------------
def _pick_batch_tile(B, T, target_rows=512):
    """Largest divisor of B whose (bt*T)-row tile stays under the row target and is
    sublane aligned, preferring a choice that leaves >= 2 grid steps so the DMA
    pipeline has something to overlap and v7x megacore can shard the axis.
    target_rows is sized for v7x (64 MiB VMEM); v6e/v5e (128 MiB) tolerate ~2x."""
    divisors = [d for d in range(1, B + 1) if B % d == 0]
    ok = [d for d in divisors
          if d * T <= target_rows and ((d * T) % 8 == 0 or d == B)]
    if not ok:
        return B
    multi = [d for d in ok if B // d >= 2]
    return max(multi) if multi else max(ok)


# ----------------------------------------------------------------------------
# Wrapper: one pallas_call for the whole forward pass
# ----------------------------------------------------------------------------
def tcn_forward(x, blocks, fc_w, fc_b, kernel_size, *, compute_dtype=jnp.bfloat16):
    # x: (B, T, num_inputs), channels-last
    B, T, C0 = x.shape
    O = fc_w.shape[1]
    num_blocks = len(blocks)
    has_ds = tuple("wds" in blk for blk in blocks)
    dilations = tuple(2 ** i for i in range(num_blocks))
    C_last = blocks[-1]["w2"].shape[-1]

    bt = _pick_batch_tile(B, T)
    num_tiles = pl.cdiv(B, bt)          # bt divides B, so this is exact
    N = bt * T

    x2 = x.reshape(B * T, C0)           # batch folded into the matmul M dimension

    # Matmul weights go to the MXU in compute_dtype (bf16 by default, f32
    # accumulation); biases stay f32 (added post-accumulation).
    inputs = [x2]
    for blk in blocks:
        params = [blk["w1"].astype(compute_dtype), blk["b1"],
                  blk["w2"].astype(compute_dtype), blk["b2"]]
        if "wds" in blk:
            params += [blk["wds"].astype(compute_dtype), blk["bds"]]
        inputs.extend(params)
    inputs += [fc_w.astype(compute_dtype), fc_b]

    def _resident_spec(a):
        # Full-array block with a constant block index: stays VMEM-resident
        # across all grid steps (no re-DMA of weights/biases).
        nd = a.ndim
        return pl.BlockSpec(a.shape, lambda i, _nd=nd: (0,) * _nd)

    in_specs = [pl.BlockSpec((N, C0), lambda i: (i, 0))]      # activation tile
    in_specs += [_resident_spec(a) for a in inputs[1:]]

    scratch_shapes = []
    if bt > 1:
        scratch_shapes.append(pltpu.VMEM((N, C_last), jnp.float32))

    kernel = _make_fused_tcn_kernel(num_blocks, has_ds, kernel_size, T, bt,
                                    dilations, compute_dtype)

    out3 = pl.pallas_call(
        kernel,
        out_shape=jax.ShapeDtypeStruct((num_tiles, bt, O), jnp.float32),
        grid_spec=pltpu.PrefetchScalarGridSpec(
            num_scalar_prefetch=0,
            grid=(num_tiles,),
            in_specs=in_specs,
            out_specs=pl.BlockSpec((1, bt, O), lambda i: (i, 0, 0)),
            scratch_shapes=scratch_shapes,
        ),
        compiler_params=pltpu.CompilerParams(
            # Batch tiles are independent -> megacore-shardable on v7x.
            dimension_semantics=("parallel",),
            # Explicit scoped-VMEM limit: above v5e's 16 MiB default, safely under
            # v7x's 64 MiB physical VMEM; this kernel's working set is tiny.
            vmem_limit_bytes=32 * 1024 * 1024,
        ),
    )(*inputs)
    return out3.reshape(B, O)


tcn_forward_jit = jax.jit(tcn_forward, static_argnums=(4,),
                          static_argnames=("compute_dtype",))


# ----------------------------------------------------------------------------
# Parameter init (matches the reparametrized PyTorch init at t=0)
# ----------------------------------------------------------------------------
def init_params(key, num_inputs, num_outputs, num_channels, kernel_size):
    blocks = []
    in_ch = num_inputs
    for out_ch in num_channels:
        key, k1, k2, k3, k4, k5, k6 = jax.random.split(key, 7)
        blk = {
            "w1": 0.01 * jax.random.normal(k1, (kernel_size, in_ch, out_ch), jnp.float32),
            "b1": 0.05 * jax.random.normal(k2, (1, out_ch), jnp.float32),
            "w2": 0.01 * jax.random.normal(k3, (kernel_size, out_ch, out_ch), jnp.float32),
            "b2": 0.05 * jax.random.normal(k4, (1, out_ch), jnp.float32),
        }
        if in_ch != out_ch:
            blk["wds"] = 0.01 * jax.random.normal(k5, (in_ch, out_ch), jnp.float32)
            blk["bds"] = 0.05 * jax.random.normal(k6, (1, out_ch), jnp.float32)
        blocks.append(blk)
        in_ch = out_ch
    key, k7, k8 = jax.random.split(key, 3)
    bound = 1.0 / jnp.sqrt(float(num_channels[-1]))
    fc_w = jax.random.uniform(k7, (num_channels[-1], num_outputs), jnp.float32, -bound, bound)
    fc_b = jax.random.uniform(k8, (1, num_outputs), jnp.float32, -bound, bound)
    return blocks, fc_w, fc_b


# ----------------------------------------------------------------------------
# Pure-JAX reference (same math, f32, no Pallas) for the correctness check
# ----------------------------------------------------------------------------
def _conv_ref(x, w, b, d):
    k = w.shape[0]
    p = (k - 1) * d
    T = x.shape[1]
    xp = jnp.pad(x, ((0, 0), (p, 0), (0, 0)))
    acc = jnp.zeros((x.shape[0], T, w.shape[2]), jnp.float32)
    for j in range(k):
        acc = acc + jnp.einsum("btc,co->bto", xp[:, j * d: j * d + T, :], w[j])
    return jnp.maximum(acc + b[None, :, :], 0.0)


def tcn_forward_ref(x, blocks, fc_w, fc_b, kernel_size):
    h = x
    for i, blk in enumerate(blocks):
        d = 2 ** i
        x_in = h
        y1 = _conv_ref(h, blk["w1"], blk["b1"], d)
        y2 = _conv_ref(y1, blk["w2"], blk["b2"], d)
        if "wds" in blk:
            res = jnp.einsum("btc,co->bto", x_in, blk["wds"]) + blk["bds"][None, :, :]
        else:
            res = x_in
        h = jnp.maximum(y2 + res, 0.0)
    return h[:, -1, :] @ fc_w + fc_b


# ----------------------------------------------------------------------------
if __name__ == "__main__":
    # Small config consistent with the module: num_inputs=4 features,
    # num_channels=[16, 32], num_outputs=3, kernel_size=2, batch=2, seq=8.
    B, T = 2, 8
    num_inputs, num_outputs = 4, 3
    num_channels = [16, 32]
    kernel_size = 2
    # TODO(synk): Dropout(p=0.2) is training-only; treated as identity (eval).

    key = jax.random.PRNGKey(0)
    key, kx = jax.random.split(key)
    x = jax.random.normal(kx, (B, T, num_inputs), jnp.float32)

    blocks, fc_w, fc_b = init_params(key, num_inputs, num_outputs, num_channels, kernel_size)

    out = tcn_forward_jit(x, blocks, fc_w, fc_b, kernel_size)
    out = jax.block_until_ready(out)

    ref = tcn_forward_ref(x, blocks, fc_w, fc_b, kernel_size)
    assert out.shape == (B, num_outputs)
    # bf16 MXU operands (f32 accumulation) -> relaxed tolerance vs the f32 reference.
    assert jnp.allclose(out, ref, rtol=2e-2, atol=2e-2), (out, ref)

    print("KERNEL_OK")
</pallas_src>

<mosaic_0001>
module attributes {stable_mosaic.version = 11 : i64} {
  func.func @kernel(%arg0: i32, %arg1: memref<8x4xf32, #tpu.memory_space<vmem>>, %arg2: memref<2x4x16xbf16, #tpu.memory_space<vmem>>, %arg3: memref<1x16xf32, #tpu.memory_space<vmem>>, %arg4: memref<2x16x16xbf16, #tpu.memory_space<vmem>>, %arg5: memref<1x16xf32, #tpu.memory_space<vmem>>, %arg6: memref<4x16xbf16, #tpu.memory_space<vmem>>, %arg7: memref<1x16xf32, #tpu.memory_space<vmem>>, %arg8: memref<2x16x32xbf16, #tpu.memory_space<vmem>>, %arg9: memref<1x32xf32, #tpu.memory_space<vmem>>, %arg10: memref<2x32x32xbf16, #tpu.memory_space<vmem>>, %arg11: memref<1x32xf32, #tpu.memory_space<vmem>>, %arg12: memref<16x32xbf16, #tpu.memory_space<vmem>>, %arg13: memref<1x32xf32, #tpu.memory_space<vmem>>, %arg14: memref<32x3xbf16, #tpu.memory_space<vmem>>, %arg15: memref<1x3xf32, #tpu.memory_space<vmem>>, %arg16: memref<1x1x3xf32, #tpu.memory_space<vmem>>) attributes {dimension_semantics = [#tpu.dimension_semantics<parallel>], iteration_bounds = array<i64: 2>, scalar_prefetch = 0 : i64, scratch_operands = 0 : i64, tpu.core_type = #tpu.core_type<tc>, window_params = [{transform_indices = @transform_0, window_bounds = array<i64: 8, 4>}, {pipeline_mode = #tpu.pipeline_mode<synchronous>, transform_indices = @transform_1, window_bounds = array<i64: 2, 4, 16>}, {pipeline_mode = #tpu.pipeline_mode<synchronous>, transform_indices = @transform_2, window_bounds = array<i64: 1, 16>}, {pipeline_mode = #tpu.pipeline_mode<synchronous>, transform_indices = @transform_3, window_bounds = array<i64: 2, 16, 16>}, {pipeline_mode = #tpu.pipeline_mode<synchronous>, transform_indices = @transform_4, window_bounds = array<i64: 1, 16>}, {pipeline_mode = #tpu.pipeline_mode<synchronous>, transform_indices = @transform_5, window_bounds = array<i64: 4, 16>}, {pipeline_mode = #tpu.pipeline_mode<synchronous>, transform_indices = @transform_6, window_bounds = array<i64: 1, 16>}, {pipeline_mode = #tpu.pipeline_mode<synchronous>, transform_indices = @transform_7, window_bounds = array<i64: 2, 16, 32>}, {pipeline_mode = #tpu.pipeline_mode<synchronous>, transform_indices = @transform_8, window_bounds = array<i64: 1, 32>}, {pipeline_mode = #tpu.pipeline_mode<synchronous>, transform_indices = @transform_9, window_bounds = array<i64: 2, 32, 32>}, {pipeline_mode = #tpu.pipeline_mode<synchronous>, transform_indices = @transform_10, window_bounds = array<i64: 1, 32>}, {pipeline_mode = #tpu.pipeline_mode<synchronous>, transform_indices = @transform_11, window_bounds = array<i64: 16, 32>}, {pipeline_mode = #tpu.pipeline_mode<synchronous>, transform_indices = @transform_12, window_bounds = array<i64: 1, 32>}, {pipeline_mode = #tpu.pipeline_mode<synchronous>, transform_indices = @transform_13, window_bounds = array<i64: 32, 3>}, {pipeline_mode = #tpu.pipeline_mode<synchronous>, transform_indices = @transform_14, window_bounds = array<i64: 1, 3>}, {transform_indices = @transform_15, window_bounds = array<i64: 1, 1, 3>}]} {
    %0 = tpu.iota {dimensions = array<i32: 0>} : vector<8x1xi32>
    %c7_i32 = arith.constant 7 : i32
    %1 = vector.broadcast %c7_i32 : i32 to vector<8x1xi32>
    %2 = arith.andi %0, %1 : vector<8x1xi32>
    %c1_i32 = arith.constant 1 : i32
    %3 = vector.broadcast %c1_i32 : i32 to vector<8x1xi32>
    %4 = arith.cmpi sge, %2, %3 : vector<8x1xi32>
    %c2_i32 = arith.constant 2 : i32
    %5 = vector.broadcast %c2_i32 : i32 to vector<8x1xi32>
    %6 = arith.cmpi sge, %2, %5 : vector<8x1xi32>
    %c0 = arith.constant 0 : index
    %c0_0 = arith.constant 0 : index
    %7 = vector.load %arg1[%c0, %c0_0] : memref<8x4xf32, #tpu.memory_space<vmem>>, vector<8x4xf32>
    %c1_i32_1 = arith.constant 1 : i32
    %8 = tpu.dynamic_rotate %7 by %c1_i32_1 dim 0 : vector<8x4xf32>, i32 -> vector<8x4xf32>
    %cst = arith.constant 0.000000e+00 : f32
    %9 = vector.broadcast %cst : f32 to vector<8x4xf32>
    %10 = vector.shape_cast %4 : vector<8x1xi1> to vector<8x1xi1>
    %11 = vector.broadcast %10 : vector<8x1xi1> to vector<8x4xi1>
    %12 = arith.select %11, %8, %9 : vector<8x4xi1>, vector<8x4xf32>
    %13 = arith.truncf %12 : vector<8x4xf32> to vector<8x4xbf16>
    %c0_2 = arith.constant 0 : index
    %c0_3 = arith.constant 0 : index
    %c0_4 = arith.constant 0 : index
    %14 = vector.load %arg2[%c0_2, %c0_3, %c0_4] : memref<2x4x16xbf16, #tpu.memory_space<vmem>>, vector<1x4x16xbf16>
    %15 = vector.shape_cast %14 : vector<1x4x16xbf16> to vector<4x16xbf16>
    %cst_5 = arith.constant dense<0.000000e+00> : vector<8x16xf32>
    %16 = tpu.matmul %13, %15, %cst_5 {dimension_numbers = #tpu.dot_dimension_numbers<[1], [0], [0], [1], [0, 0, 1, 1], [], []>} : vector<8x4xbf16>, vector<4x16xbf16>, vector<8x16xf32> -> vector<8x16xf32>
    %17 = arith.truncf %7 : vector<8x4xf32> to vector<8x4xbf16>
    %c1 = arith.constant 1 : index
    %c0_6 = arith.constant 0 : index
    %c0_7 = arith.constant 0 : index
    %18 = vector.load %arg2[%c1, %c0_6, %c0_7] : memref<2x4x16xbf16, #tpu.memory_space<vmem>>, vector<1x4x16xbf16>
    %19 = vector.shape_cast %18 : vector<1x4x16xbf16> to vector<4x16xbf16>
    %cst_8 = arith.constant dense<0.000000e+00> : vector<8x16xf32>
    %20 = tpu.matmul %17, %19, %cst_8 {dimension_numbers = #tpu.dot_dimension_numbers<[1], [0], [0], [1], [0, 0, 1, 1], [], []>} : vector<8x4xbf16>, vector<4x16xbf16>, vector<8x16xf32> -> vector<8x16xf32>
    %21 = arith.addf %16, %20 : vector<8x16xf32>
    %c0_9 = arith.constant 0 : index
    %c0_10 = arith.constant 0 : index
    %22 = vector.load %arg3[%c0_9, %c0_10] : memref<1x16xf32, #tpu.memory_space<vmem>>, vector<1x16xf32>
    %23 = vector.broadcast %22 : vector<1x16xf32> to vector<8x16xf32>
    %24 = arith.addf %21, %23 : vector<8x16xf32>
    %cst_11 = arith.constant 0.000000e+00 : f32
    %25 = vector.broadcast %cst_11 : f32 to vector<8x16xf32>
    %26 = arith.maximumf %24, %25 : vector<8x16xf32>
    %c1_i32_12 = arith.constant 1 : i32
    %27 = tpu.dynamic_rotate %26 by %c1_i32_12 dim 0 : vector<8x16xf32>, i32 -> vector<8x16xf32>
    %cst_13 = arith.constant 0.000000e+00 : f32
    %28 = vector.broadcast %cst_13 : f32 to vector<8x16xf32>
    %29 = vector.shape_cast %4 : vector<8x1xi1> to vector<8x1xi1>
    %30 = vector.broadcast %29 : vector<8x1xi1> to vector<8x16xi1>
    %31 = arith.select %30, %27, %28 : vector<8x16xi1>, vector<8x16xf32>
    %32 = arith.truncf %31 : vector<8x16xf32> to vector<8x16xbf16>
    %c0_14 = arith.constant 0 : index
    %c0_15 = arith.constant 0 : index
    %c0_16 = arith.constant 0 : index
    %33 = vector.load %arg4[%c0_14, %c0_15, %c0_16] : memref<2x16x16xbf16, #tpu.memory_space<vmem>>, vector<1x16x16xbf16>
    %34 = vector.shape_cast %33 : vector<1x16x16xbf16> to vector<16x16xbf16>
    %cst_17 = arith.constant dense<0.000000e+00> : vector<8x16xf32>
    %35 = tpu.matmul %32, %34, %cst_17 {dimension_numbers = #tpu.dot_dimension_numbers<[1], [0], [0], [1], [0, 0, 1, 1], [], []>} : vector<8x16xbf16>, vector<16x16xbf16>, vector<8x16xf32> -> vector<8x16xf32>
    %36 = arith.truncf %26 : vector<8x16xf32> to vector<8x16xbf16>
    %c1_18 = arith.constant 1 : index
    %c0_19 = arith.constant 0 : index
    %c0_20 = arith.constant 0 : index
    %37 = vector.load %arg4[%c1_18, %c0_19, %c0_20] : memref<2x16x16xbf16, #tpu.memory_space<vmem>>, vector<1x16x16xbf16>
    %38 = vector.shape_cast %37 : vector<1x16x16xbf16> to vector<16x16xbf16>
    %cst_21 = arith.constant dense<0.000000e+00> : vector<8x16xf32>
    %39 = tpu.matmul %36, %38, %cst_21 {dimension_numbers = #tpu.dot_dimension_numbers<[1], [0], [0], [1], [0, 0, 1, 1], [], []>} : vector<8x16xbf16>, vector<16x16xbf16>, vector<8x16xf32> -> vector<8x16xf32>
    %40 = arith.addf %35, %39 : vector<8x16xf32>
    %c0_22 = arith.constant 0 : index
    %c0_23 = arith.constant 0 : index
    %41 = vector.load %arg5[%c0_22, %c0_23] : memref<1x16xf32, #tpu.memory_space<vmem>>, vector<1x16xf32>
    %42 = vector.broadcast %41 : vector<1x16xf32> to vector<8x16xf32>
    %43 = arith.addf %40, %42 : vector<8x16xf32>
    %cst_24 = arith.constant 0.000000e+00 : f32
    %44 = vector.broadcast %cst_24 : f32 to vector<8x16xf32>
    %45 = arith.maximumf %43, %44 : vector<8x16xf32>
    %46 = arith.truncf %7 : vector<8x4xf32> to vector<8x4xbf16>
    %c0_25 = arith.constant 0 : index
    %c0_26 = arith.constant 0 : index
    %47 = vector.load %arg6[%c0_25, %c0_26] : memref<4x16xbf16, #tpu.memory_space<vmem>>, vector<4x16xbf16>
    %cst_27 = arith.constant dense<0.000000e+00> : vector<8x16xf32>
    %48 = tpu.matmul %46, %47, %cst_27 {dimension_numbers = #tpu.dot_dimension_numbers<[1], [0], [0], [1], [0, 0, 1, 1], [], []>} : vector<8x4xbf16>, vector<4x16xbf16>, vector<8x16xf32> -> vector<8x16xf32>
    %c0_28 = arith.constant 0 : index
    %c0_29 = arith.constant 0 : index
    %49 = vector.load %arg7[%c0_28, %c0_29] : memref<1x16xf32, #tpu.memory_space<vmem>>, vector<1x16xf32>
    %50 = vector.broadcast %49 : vector<1x16xf32> to vector<8x16xf32>
    %51 = arith.addf %48, %50 : vector<8x16xf32>
    %52 = arith.addf %45, %51 : vector<8x16xf32>
    %cst_30 = arith.constant 0.000000e+00 : f32
    %53 = vector.broadcast %cst_30 : f32 to vector<8x16xf32>
    %54 = arith.maximumf %52, %53 : vector<8x16xf32>
    %c2_i32_31 = arith.constant 2 : i32
    %55 = tpu.dynamic_rotate %54 by %c2_i32_31 dim 0 : vector<8x16xf32>, i32 -> vector<8x16xf32>
    %cst_32 = arith.constant 0.000000e+00 : f32
    %56 = vector.broadcast %cst_32 : f32 to vector<8x16xf32>
    %57 = vector.shape_cast %6 : vector<8x1xi1> to vector<8x1xi1>
    %58 = vector.broadcast %57 : vector<8x1xi1> to vector<8x16xi1>
    %59 = arith.select %58, %55, %56 : vector<8x16xi1>, vector<8x16xf32>
    %60 = arith.truncf %59 : vector<8x16xf32> to vector<8x16xbf16>
    %c0_33 = arith.constant 0 : index
    %c0_34 = arith.constant 0 : index
    %c0_35 = arith.constant 0 : index
    %61 = vector.load %arg8[%c0_33, %c0_34, %c0_35] : memref<2x16x32xbf16, #tpu.memory_space<vmem>>, vector<1x16x32xbf16>
    %62 = vector.shape_cast %61 : vector<1x16x32xbf16> to vector<16x32xbf16>
    %cst_36 = arith.constant dense<0.000000e+00> : vector<8x32xf32>
    %63 = tpu.matmul %60, %62, %cst_36 {dimension_numbers = #tpu.dot_dimension_numbers<[1], [0], [0], [1], [0, 0, 1, 1], [], []>} : vector<8x16xbf16>, vector<16x32xbf16>, vector<8x32xf32> -> vector<8x32xf32>
    %64 = arith.truncf %54 : vector<8x16xf32> to vector<8x16xbf16>
    %c1_37 = arith.constant 1 : index
    %c0_38 = arith.constant 0 : index
    %c0_39 = arith.constant 0 : index
    %65 = vector.load %arg8[%c1_37, %c0_38, %c0_39] : memref<2x16x32xbf16, #tpu.memory_space<vmem>>, vector<1x16x32xbf16>
    %66 = vector.shape_cast %65 : vector<1x16x32xbf16> to vector<16x32xbf16>
    %cst_40 = arith.constant dense<0.000000e+00> : vector<8x32xf32>
    %67 = tpu.matmul %64, %66, %cst_40 {dimension_numbers = #tpu.dot_dimension_numbers<[1], [0], [0], [1], [0, 0, 1, 1], [], []>} : vector<8x16xbf16>, vector<16x32xbf16>, vector<8x32xf32> -> vector<8x32xf32>
    %68 = arith.addf %63, %67 : vector<8x32xf32>
    %c0_41 = arith.constant 0 : index
    %c0_42 = arith.constant 0 : index
    %69 = vector.load %arg9[%c0_41, %c0_42] : memref<1x32xf32, #tpu.memory_space<vmem>>, vector<1x32xf32>
    %70 = vector.broadcast %69 : vector<1x32xf32> to vector<8x32xf32>
    %71 = arith.addf %68, %70 : vector<8x32xf32>
    %cst_43 = arith.constant 0.000000e+00 : f32
    %72 = vector.broadcast %cst_43 : f32 to vector<8x32xf32>
    %73 = arith.maximumf %71, %72 : vector<8x32xf32>
    %c2_i32_44 = arith.constant 2 : i32
    %74 = tpu.dynamic_rotate %73 by %c2_i32_44 dim 0 : vector<8x32xf32>, i32 -> vector<8x32xf32>
    %cst_45 = arith.constant 0.000000e+00 : f32
    %75 = vector.broadcast %cst_45 : f32 to vector<8x32xf32>
    %76 = vector.shape_cast %6 : vector<8x1xi1> to vector<8x1xi1>
    %77 = vector.broadcast %76 : vector<8x1xi1> to vector<8x32xi1>
    %78 = arith.select %77, %74, %75 : vector<8x32xi1>, vector<8x32xf32>
    %79 = arith.truncf %78 : vector<8x32xf32> to vector<8x32xbf16>
    %c0_46 = arith.constant 0 : index
    %c0_47 = arith.constant 0 : index
    %c0_48 = arith.constant 0 : index
    %80 = vector.load %arg10[%c0_46, %c0_47, %c0_48] : memref<2x32x32xbf16, #tpu.memory_space<vmem>>, vector<1x32x32xbf16>
    %81 = vector.shape_cast %80 : vector<1x32x32xbf16> to vector<32x32xbf16>
    %cst_49 = arith.constant dense<0.000000e+00> : vector<8x32xf32>
    %82 = tpu.matmul %79, %81, %cst_49 {dimension_numbers = #tpu.dot_dimension_numbers<[1], [0], [0], [1], [0, 0, 1, 1], [], []>} : vector<8x32xbf16>, vector<32x32xbf16>, vector<8x32xf32> -> vector<8x32xf32>
    %83 = arith.truncf %73 : vector<8x32xf32> to vector<8x32xbf16>
    %c1_50 = arith.constant 1 : index
    %c0_51 = arith.constant 0 : index
    %c0_52 = arith.constant 0 : index
    %84 = vector.load %arg10[%c1_50, %c0_51, %c0_52] : memref<2x32x32xbf16, #tpu.memory_space<vmem>>, vector<1x32x32xbf16>
    %85 = vector.shape_cast %84 : vector<1x32x32xbf16> to vector<32x32xbf16>
    %cst_53 = arith.constant dense<0.000000e+00> : vector<8x32xf32>
    %86 = tpu.matmul %83, %85, %cst_53 {dimension_numbers = #tpu.dot_dimension_numbers<[1], [0], [0], [1], [0, 0, 1, 1], [], []>} : vector<8x32xbf16>, vector<32x32xbf16>, vector<8x32xf32> -> vector<8x32xf32>
    %87 = arith.addf %82, %86 : vector<8x32xf32>
    %c0_54 = arith.constant 0 : index
    %c0_55 = arith.constant 0 : index
    %88 = vector.load %arg11[%c0_54, %c0_55] : memref<1x32xf32, #tpu.memory_space<vmem>>, vector<1x32xf32>
    %89 = vector.broadcast %88 : vector<1x32xf32> to vector<8x32xf32>
    %90 = arith.addf %87, %89 : vector<8x32xf32>
    %cst_56 = arith.constant 0.000000e+00 : f32
    %91 = vector.broadcast %cst_56 : f32 to vector<8x32xf32>
    %92 = arith.maximumf %90, %91 : vector<8x32xf32>
    %93 = arith.truncf %54 : vector<8x16xf32> to vector<8x16xbf16>
    %c0_57 = arith.constant 0 : index
    %c0_58 = arith.constant 0 : index
    %94 = vector.load %arg12[%c0_57, %c0_58] : memref<16x32xbf16, #tpu.memory_space<vmem>>, vector<16x32xbf16>
    %cst_59 = arith.constant dense<0.000000e+00> : vector<8x32xf32>
    %95 = tpu.matmul %93, %94, %cst_59 {dimension_numbers = #tpu.dot_dimension_numbers<[1], [0], [0], [1], [0, 0, 1, 1], [], []>} : vector<8x16xbf16>, vector<16x32xbf16>, vector<8x32xf32> -> vector<8x32xf32>
    %c0_60 = arith.constant 0 : index
    %c0_61 = arith.constant 0 : index
    %96 = vector.load %arg13[%c0_60, %c0_61] : memref<1x32xf32, #tpu.memory_space<vmem>>, vector<1x32xf32>
    %97 = vector.broadcast %96 : vector<1x32xf32> to vector<8x32xf32>
    %98 = arith.addf %95, %97 : vector<8x32xf32>
    %99 = arith.addf %92, %98 : vector<8x32xf32>
    %cst_62 = arith.constant 0.000000e+00 : f32
    %100 = vector.broadcast %cst_62 : f32 to vector<8x32xf32>
    %101 = arith.maximumf %99, %100 : vector<8x32xf32>
    %102 = vector.extract_strided_slice %101 {offsets = [7, 0], sizes = [1, 32], strides = [1, 1]} : vector<8x32xf32> to vector<1x32xf32>
    %103 = arith.truncf %102 : vector<1x32xf32> to vector<1x32xbf16>
    %c0_63 = arith.constant 0 : index
    %c0_64 = arith.constant 0 : index
    %104 = vector.load %arg14[%c0_63, %c0_64] : memref<32x3xbf16, #tpu.memory_space<vmem>>, vector<32x3xbf16>
    %cst_65 = arith.constant dense<0.000000e+00> : vector<1x3xf32>
    %105 = tpu.matmul %103, %104, %cst_65 {dimension_numbers = #tpu.dot_dimension_numbers<[1], [0], [0], [1], [0, 0, 1, 1], [], []>} : vector<1x32xbf16>, vector<32x3xbf16>, vector<1x3xf32> -> vector<1x3xf32>
    %c0_66 = arith.constant 0 : index
    %c0_67 = arith.constant 0 : index
    %106 = vector.load %arg15[%c0_66, %c0_67] : memref<1x3xf32, #tpu.memory_space<vmem>>, vector<1x3xf32>
    %107 = arith.addf %105, %106 : vector<1x3xf32>
    %108 = vector.shape_cast %107 : vector<1x3xf32> to vector<1x1x3xf32>
    %c0_68 = arith.constant 0 : index
    %c0_69 = arith.constant 0 : index
    %c0_70 = arith.constant 0 : index
    %109 = vector.load %arg16[%c0_68, %c0_69, %c0_70] : memref<1x1x3xf32, #tpu.memory_space<vmem>>, vector<1x1x3xf32>
    tpu.vector_store %arg16[%c0_68, %c0_69, %c0_70], %108 {strides = array<i32>} : memref<1x1x3xf32, #tpu.memory_space<vmem>>, vector<1x1x3xf32>,
    return
  }
  func.func @transform_0(%arg0: i32) -> (i32, i32) {
    %c0_i32 = arith.constant 0 : i32
    %c0_i32_0 = arith.constant 0 : i32
    return %arg0, %c0_i32 : i32, i32
  }
  func.func @transform_1(%arg0: i32) -> (i32, i32, i32) {
    %c0_i32 = arith.constant 0 : i32
    %c0_i32_0 = arith.constant 0 : i32
    %c0_i32_1 = arith.constant 0 : i32
    %c0_i32_2 = arith.constant 0 : i32
    return %c0_i32, %c0_i32_0, %c0_i32_1 : i32, i32, i32
  }
  func.func @transform_2(%arg0: i32) -> (i32, i32) {
    %c0_i32 = arith.constant 0 : i32
    %c0_i32_0 = arith.constant 0 : i32
    %c0_i32_1 = arith.constant 0 : i32
    return %c0_i32, %c0_i32_0 : i32, i32
  }
  func.func @transform_3(%arg0: i32) -> (i32, i32, i32) {
    %c0_i32 = arith.constant 0 : i32
    %c0_i32_0 = arith.constant 0 : i32
    %c0_i32_1 = arith.constant 0 : i32
    %c0_i32_2 = arith.constant 0 : i32
    return %c0_i32, %c0_i32_0, %c0_i32_1 : i32, i32, i32
  }
  func.func @transform_4(%arg0: i32) -> (i32, i32) {
    %c0_i32 = arith.constant 0 : i32
    %c0_i32_0 = arith.constant 0 : i32
    %c0_i32_1 = arith.constant 0 : i32
    return %c0_i32, %c0_i32_0 : i32, i32
  }
  func.func @transform_5(%arg0: i32) -> (i32, i32) {
    %c0_i32 = arith.constant 0 : i32
    %c0_i32_0 = arith.constant 0 : i32
    %c0_i32_1 = arith.constant 0 : i32
    return %c0_i32, %c0_i32_0 : i32, i32
  }
  func.func @transform_6(%arg0: i32) -> (i32, i32) {
    %c0_i32 = arith.constant 0 : i32
    %c0_i32_0 = arith.constant 0 : i32
    %c0_i32_1 = arith.constant 0 : i32
    return %c0_i32, %c0_i32_0 : i32, i32
  }
  func.func @transform_7(%arg0: i32) -> (i32, i32, i32) {
    %c0_i32 = arith.constant 0 : i32
    %c0_i32_0 = arith.constant 0 : i32
    %c0_i32_1 = arith.constant 0 : i32
    %c0_i32_2 = arith.constant 0 : i32
    return %c0_i32, %c0_i32_0, %c0_i32_1 : i32, i32, i32
  }
  func.func @transform_8(%arg0: i32) -> (i32, i32) {
    %c0_i32 = arith.constant 0 : i32
    %c0_i32_0 = arith.constant 0 : i32
    %c0_i32_1 = arith.constant 0 : i32
    return %c0_i32, %c0_i32_0 : i32, i32
  }
  func.func @transform_9(%arg0: i32) -> (i32, i32, i32) {
    %c0_i32 = arith.constant 0 : i32
    %c0_i32_0 = arith.constant 0 : i32
    %c0_i32_1 = arith.constant 0 : i32
    %c0_i32_2 = arith.constant 0 : i32
    return %c0_i32, %c0_i32_0, %c0_i32_1 : i32, i32, i32
  }
  func.func @transform_10(%arg0: i32) -> (i32, i32) {
    %c0_i32 = arith.constant 0 : i32
    %c0_i32_0 = arith.constant 0 : i32
    %c0_i32_1 = arith.constant 0 : i32
    return %c0_i32, %c0_i32_0 : i32, i32
  }
  func.func @transform_11(%arg0: i32) -> (i32, i32) {
    %c0_i32 = arith.constant 0 : i32
    %c0_i32_0 = arith.constant 0 : i32
    %c0_i32_1 = arith.constant 0 : i32
    return %c0_i32, %c0_i32_0 : i32, i32
  }
  func.func @transform_12(%arg0: i32) -> (i32, i32) {
    %c0_i32 = arith.constant 0 : i32
    %c0_i32_0 = arith.constant 0 : i32
    %c0_i32_1 = arith.constant 0 : i32
    return %c0_i32, %c0_i32_0 : i32, i32
  }
  func.func @transform_13(%arg0: i32) -> (i32, i32) {
    %c0_i32 = arith.constant 0 : i32
    %c0_i32_0 = arith.constant 0 : i32
    %c0_i32_1 = arith.constant 0 : i32
    return %c0_i32, %c0_i32_0 : i32, i32
  }
  func.func @transform_14(%arg0: i32) -> (i32, i32) {
    %c0_i32 = arith.constant 0 : i32
    %c0_i32_0 = arith.constant 0 : i32
    %c0_i32_1 = arith.constant 0 : i32
    return %c0_i32, %c0_i32_0 : i32, i32
  }
  func.func @transform_15(%arg0: i32) -> (i32, i32, i32) {
    %c0_i32 = arith.constant 0 : i32
    %c0_i32_0 = arith.constant 0 : i32
    %c0_i32_1 = arith.constant 0 : i32
    return %arg0, %c0_i32, %c0_i32_0 : i32, i32, i32
  }
}

</mosaic_0001>

<llo_original>
// kernel: tcn_forward.1
$region0: #{tcn_forward.1}
  #allocation0 [shape = 'u32[]', space=smem, size = 0x4, offset = 0x4, fixed_abs, tag = 'smem constant byte address 0x4 - core index']
  #allocation1 [shape = 'u32[72,128]{1,0:T(1,128)}', space=vmem, size = 0x9000, scoped, tag = 'internal scratch']
  %s0 = inlined_call_operand.vmem [shape: f32[16,4], index: 0, kind: input, shape index: {}]
  %s1 = inlined_call_operand.vmem [shape: bf16[2,4,16], index: 1, kind: input, shape index: {}]
  %s2 = inlined_call_operand.vmem [shape: f32[1,16], index: 2, kind: input, shape index: {}]
  %s3 = inlined_call_operand.vmem [shape: bf16[2,16,16], index: 3, kind: input, shape index: {}]
  %s4 = inlined_call_operand.vmem [shape: f32[1,16], index: 4, kind: input, shape index: {}]
  %s5 = inlined_call_operand.vmem [shape: bf16[4,16], index: 5, kind: input, shape index: {}]
  %s6 = inlined_call_operand.vmem [shape: f32[1,16], index: 6, kind: input, shape index: {}]
  %s7 = inlined_call_operand.vmem [shape: bf16[2,16,32], index: 7, kind: input, shape index: {}]
  %s8 = inlined_call_operand.vmem [shape: f32[1,32], index: 8, kind: input, shape index: {}]
  %s9 = inlined_call_operand.vmem [shape: bf16[2,32,32], index: 9, kind: input, shape index: {}]
  %s10 = inlined_call_operand.vmem [shape: f32[1,32], index: 10, kind: input, shape index: {}]
  %s11 = inlined_call_operand.vmem [shape: bf16[16,32], index: 11, kind: input, shape index: {}]
  %s12 = inlined_call_operand.vmem [shape: f32[1,32], index: 12, kind: input, shape index: {}]
  %s13 = inlined_call_operand.vmem [shape: bf16[32,3], index: 13, kind: input, shape index: {}]
  %s14 = inlined_call_operand.vmem [shape: f32[1,3], index: 14, kind: input, shape index: {}]
  %s15 = inlined_call_operand.hbm [shape: f32[2,1,3], index: 15, kind: output, shape index: {}]
  %s16 = sld [smem:[#allocation0]]
  $region93: #{tcn_forward.1} parent=0
    _
  %s18 = ssub.s32 1, %s16
  %s19 = scalar_select 0, %s18, %s16
  $region1: #{tcn_forward.1} parent=0
    #allocation2 [shape = 'u8[1024]{0}', space=vmem, size = 0x400, scoped, tag = 'output window, operand 0']
    #allocation3 [shape = 's32[2]{0}', space=sflag, size = 0x8, scoped, tag = 'scoped memory for tcn_forward.1']
    %20 = vsyncpa [#allocation3], 0
    %s21 = scalar_lea.sflag [#allocation3], 1
    %22 = vsyncpa %s21, 0
    loop: start=0, step=1, limit=4
    $region2: #{tcn_forward.1} parent=1 // loop_pre_header
      _
    $region3: #{tcn_forward.1} parent=1 // loop_header
      %s24 = sphi 0, %s28
      %p25 = scmp.ge.s32.totalorder %s24, 4
      %s34 = sphi 0, %s36
      %s37 = sphi 0, %s34
      %s38 = sphi 0, %s37
      %s54 = sphi 0, %s38
      %s58 = sphi 0, %s58
      %s60 = sphi 0, %s58
      %s61 = sphi 0, %s60
      %s75 = sphi 0, %s61
      %s79 = sphi 0, %s79
      %s81 = sphi 0, %s79
      %s82 = sphi 0, %s81
      %s96 = sphi 0, %s82
      %s100 = sphi 0, %s100
      %s102 = sphi 0, %s100
      %s103 = sphi 0, %s102
      %s117 = sphi 0, %s103
      %s121 = sphi 0, %s121
      %s123 = sphi 0, %s121
      %s124 = sphi 0, %s123
      %s138 = sphi 0, %s124
      %s142 = sphi 0, %s142
      %s144 = sphi 0, %s142
      %s145 = sphi 0, %s144
      %s159 = sphi 0, %s145
      %s163 = sphi 0, %s163
      %s165 = sphi 0, %s163
      %s166 = sphi 0, %s165
      %s180 = sphi 0, %s166
      %s184 = sphi 0, %s184
      %s186 = sphi 0, %s184
      %s187 = sphi 0, %s186
      %s201 = sphi 0, %s187
      %s205 = sphi 0, %s205
      %s207 = sphi 0, %s205
      %s208 = sphi 0, %s207
      %s222 = sphi 0, %s208
      %s226 = sphi 0, %s226
      %s228 = sphi 0, %s226
      %s229 = sphi 0, %s228
      %s243 = sphi 0, %s229
      %s247 = sphi 0, %s247
      %s249 = sphi 0, %s247
      %s250 = sphi 0, %s249
      %s264 = sphi 0, %s250
      %s268 = sphi 0, %s268
      %s270 = sphi 0, %s268
      %s271 = sphi 0, %s270
      %s285 = sphi 0, %s271
      %s289 = sphi 0, %s289
      %s291 = sphi 0, %s289
      %s292 = sphi 0, %s291
      %s306 = sphi 0, %s292
      %s310 = sphi 0, %s310
      %s312 = sphi 0, %s310
      %s313 = sphi 0, %s312
      %s327 = sphi 0, %s313
      %s331 = sphi 0, %s331
      %s333 = sphi 0, %s331
      %s334 = sphi 0, %s333
      %s348 = sphi 0, %s334
      %s354 = sphi 0, %s356
      %s357 = sphi 0, %s354
      %s358 = sphi 0, %s357
      %s374 = sphi 0, %s358
    $region4: #{tcn_forward.1} parent=1 // loop_header_branch
      %27 = sbr.rel (%p25) target = $region8
    $region5: #{tcn_forward.1} parent=1 // loop_body
      %s29 = ssub.s32 %s24, 1
      %s30 = ssub.s32 %s24, 2
      %s31 = sadd.s32 %s24, 1
      %s32 = ssub.s32 %s24, %s31
      %p33 = scmp.eq.s32.totalorder %s32, 0
      %s35 = sadd.s32 %s34, 1
      %s36 = scalar_select %p33, %s34, %s35
      %p39 = pneg %p33
      %p40 = scmp.eq.s32.totalorder %s24, 1
      %p41 = por %p39, %p40
      %p42 = scmp.ne.s32.totalorder %s34, %s37
      %p43 = scmp.eq.s32.totalorder %s24, 0
      %p44 = por %p42, %p43
      %p45 = scmp.ne.s32.totalorder %s34, %s37
      %p46 = scmp.eq.s32.totalorder %s29, 1
      %p47 = por %p45, %p46
      %p48 = scmp.ne.s32.totalorder %s37, %s38
      %p49 = scmp.eq.s32.totalorder %s29, 0
      %p50 = por %p48, %p49
      %p51 = scmp.ne.s32.totalorder %s37, %s38
      %p52 = scmp.eq.s32.totalorder %s30, 1
      %p53 = por %p51, %p52
      %p55 = scmp.ne.s32.totalorder %s38, %s54
      %p56 = scmp.eq.s32.totalorder %s30, 0
      %p57 = por %p55, %p56
      %s59 = sadd.s32 %s58, 1
      %p62 = scmp.eq.s32.totalorder %s24, 1
      %p63 = scmp.ne.s32.totalorder %s58, %s60
      %p64 = scmp.eq.s32.totalorder %s24, 0
      %p65 = por %p63, %p64
      %p66 = scmp.ne.s32.totalorder %s58, %s60
      %p67 = scmp.eq.s32.totalorder %s29, 1
      %p68 = por %p66, %p67
      %p69 = scmp.ne.s32.totalorder %s60, %s61
      %p70 = scmp.eq.s32.totalorder %s29, 0
      %p71 = por %p69, %p70
      %p72 = scmp.ne.s32.totalorder %s60, %s61
      %p73 = scmp.eq.s32.totalorder %s30, 1
      %p74 = por %p72, %p73
      %p76 = scmp.ne.s32.totalorder %s61, %s75
      %p77 = scmp.eq.s32.totalorder %s30, 0
      %p78 = por %p76, %p77
      %s80 = sadd.s32 %s79, 1
      %p83 = scmp.eq.s32.totalorder %s24, 1
      %p84 = scmp.ne.s32.totalorder %s79, %s81
      %p85 = scmp.eq.s32.totalorder %s24, 0
      %p86 = por %p84, %p85
      %p87 = scmp.ne.s32.totalorder %s79, %s81
      %p88 = scmp.eq.s32.totalorder %s29, 1
      %p89 = por %p87, %p88
      %p90 = scmp.ne.s32.totalorder %s81, %s82
      %p91 = scmp.eq.s32.totalorder %s29, 0
      %p92 = por %p90, %p91
      %p93 = scmp.ne.s32.totalorder %s81, %s82
      %p94 = scmp.eq.s32.totalorder %s30, 1
      %p95 = por %p93, %p94
      %p97 = scmp.ne.s32.totalorder %s82, %s96
      %p98 = scmp.eq.s32.totalorder %s30, 0
      %p99 = por %p97, %p98
      %s101 = sadd.s32 %s100, 1
      %p104 = scmp.eq.s32.totalorder %s24, 1
      %p105 = scmp.ne.s32.totalorder %s100, %s102
      %p106 = scmp.eq.s32.totalorder %s24, 0
      %p107 = por %p105, %p106
      %p108 = scmp.ne.s32.totalorder %s100, %s102
      %p109 = scmp.eq.s32.totalorder %s29, 1
      %p110 = por %p108, %p109
      %p111 = scmp.ne.s32.totalorder %s102, %s103
      %p112 = scmp.eq.s32.totalorder %s29, 0
      %p113 = por %p111, %p112
      %p114 = scmp.ne.s32.totalorder %s102, %s103
      %p115 = scmp.eq.s32.totalorder %s30, 1
      %p116 = por %p114, %p115
      %p118 = scmp.ne.s32.totalorder %s103, %s117
      %p119 = scmp.eq.s32.totalorder %s30, 0
      %p120 = por %p118, %p119
      %s122 = sadd.s32 %s121, 1
      %p125 = scmp.eq.s32.totalorder %s24, 1
      %p126 = scmp.ne.s32.totalorder %s121, %s123
      %p127 = scmp.eq.s32.totalorder %s24, 0
      %p128 = por %p126, %p127
      %p129 = scmp.ne.s32.totalorder %s121, %s123
      %p130 = scmp.eq.s32.totalorder %s29, 1
      %p131 = por %p129, %p130
      %p132 = scmp.ne.s32.totalorder %s123, %s124
      %p133 = scmp.eq.s32.totalorder %s29, 0
      %p134 = por %p132, %p133
      %p135 = scmp.ne.s32.totalorder %s123, %s124
      %p136 = scmp.eq.s32.totalorder %s30, 1
      %p137 = por %p135, %p136
      %p139 = scmp.ne.s32.totalorder %s124, %s138
      %p140 = scmp.eq.s32.totalorder %s30, 0
      %p141 = por %p139, %p140
      %s143 = sadd.s32 %s142, 1
      %p146 = scmp.eq.s32.totalorder %s24, 1
      %p147 = scmp.ne.s32.totalorder %s142, %s144
      %p148 = scmp.eq.s32.totalorder %s24, 0
      %p149 = por %p147, %p148
      %p150 = scmp.ne.s32.totalorder %s142, %s144
      %p151 = scmp.eq.s32.totalorder %s29, 1
      %p152 = por %p150, %p151
      %p153 = scmp.ne.s32.totalorder %s144, %s145
      %p154 = scmp.eq.s32.totalorder %s29, 0
      %p155 = por %p153, %p154
      %p156 = scmp.ne.s32.totalorder %s144, %s145
      %p157 = scmp.eq.s32.totalorder %s30, 1
      %p158 = por %p156, %p157
      %p160 = scmp.ne.s32.totalorder %s145, %s159
      %p161 = scmp.eq.s32.totalorder %s30, 0
      %p162 = por %p160, %p161
      %s164 = sadd.s32 %s163, 1
      %p167 = scmp.eq.s32.totalorder %s24, 1
      %p168 = scmp.ne.s32.totalorder %s163, %s165
      %p169 = scmp.eq.s32.totalorder %s24, 0
      %p170 = por %p168, %p169
      %p171 = scmp.ne.s32.totalorder %s163, %s165
      %p172 = scmp.eq.s32.totalorder %s29, 1
      %p173 = por %p171, %p172
      %p174 = scmp.ne.s32.totalorder %s165, %s166
      %p175 = scmp.eq.s32.totalorder %s29, 0
      %p176 = por %p174, %p175
      %p177 = scmp.ne.s32.totalorder %s165, %s166
      %p178 = scmp.eq.s32.totalorder %s30, 1
      %p179 = por %p177, %p178
      %p181 = scmp.ne.s32.totalorder %s166, %s180
      %p182 = scmp.eq.s32.totalorder %s30, 0
      %p183 = por %p181, %p182
      %s185 = sadd.s32 %s184, 1
      %p188 = scmp.eq.s32.totalorder %s24, 1
      %p189 = scmp.ne.s32.totalorder %s184, %s186
      %p190 = scmp.eq.s32.totalorder %s24, 0
      %p191 = por %p189, %p190
      %p192 = scmp.ne.s32.totalorder %s184, %s186
      %p193 = scmp.eq.s32.totalorder %s29, 1
      %p194 = por %p192, %p193
      %p195 = scmp.ne.s32.totalorder %s186, %s187
      %p196 = scmp.eq.s32.totalorder %s29, 0
      %p197 = por %p195, %p196
      %p198 = scmp.ne.s32.totalorder %s186, %s187
      %p199 = scmp.eq.s32.totalorder %s30, 1
      %p200 = por %p198, %p199
      %p202 = scmp.ne.s32.totalorder %s187, %s201
      %p203 = scmp.eq.s32.totalorder %s30, 0
      %p204 = por %p202, %p203
      %s206 = sadd.s32 %s205, 1
      %p209 = scmp.eq.s32.totalorder %s24, 1
      %p210 = scmp.ne.s32.totalorder %s205, %s207
      %p211 = scmp.eq.s32.totalorder %s24, 0
      %p212 = por %p210, %p211
      %p213 = scmp.ne.s32.totalorder %s205, %s207
      %p214 = scmp.eq.s32.totalorder %s29, 1
      %p215 = por %p213, %p214
      %p216 = scmp.ne.s32.totalorder %s207, %s208
      %p217 = scmp.eq.s32.totalorder %s29, 0
      %p218 = por %p216, %p217
      %p219 = scmp.ne.s32.totalorder %s207, %s208
      %p220 = scmp.eq.s32.totalorder %s30, 1
      %p221 = por %p219, %p220
      %p223 = scmp.ne.s32.totalorder %s208, %s222
      %p224 = scmp.eq.s32.totalorder %s30, 0
      %p225 = por %p223, %p224
      %s227 = sadd.s32 %s226, 1
      %p230 = scmp.eq.s32.totalorder %s24, 1
      %p231 = scmp.ne.s32.totalorder %s226, %s228
      %p232 = scmp.eq.s32.totalorder %s24, 0
      %p233 = por %p231, %p232
      %p234 = scmp.ne.s32.totalorder %s226, %s228
      %p235 = scmp.eq.s32.totalorder %s29, 1
      %p236 = por %p234, %p235
      %p237 = scmp.ne.s32.totalorder %s228, %s229
      %p238 = scmp.eq.s32.totalorder %s29, 0
      %p239 = por %p237, %p238
      %p240 = scmp.ne.s32.totalorder %s228, %s229
      %p241 = scmp.eq.s32.totalorder %s30, 1
      %p242 = por %p240, %p241
      %p244 = scmp.ne.s32.totalorder %s229, %s243
      %p245 = scmp.eq.s32.totalorder %s30, 0
      %p246 = por %p244, %p245
      %s248 = sadd.s32 %s247, 1
      %p251 = scmp.eq.s32.totalorder %s24, 1
      %p252 = scmp.ne.s32.totalorder %s247, %s249
      %p253 = scmp.eq.s32.totalorder %s24, 0
      %p254 = por %p252, %p253
      %p255 = scmp.ne.s32.totalorder %s247, %s249
      %p256 = scmp.eq.s32.totalorder %s29, 1
      %p257 = por %p255, %p256
      %p258 = scmp.ne.s32.totalorder %s249, %s250
      %p259 = scmp.eq.s32.totalorder %s29, 0
      %p260 = por %p258, %p259
      %p261 = scmp.ne.s32.totalorder %s249, %s250
      %p262 = scmp.eq.s32.totalorder %s30, 1
      %p263 = por %p261, %p262
      %p265 = scmp.ne.s32.totalorder %s250, %s264
      %p266 = scmp.eq.s32.totalorder %s30, 0
      %p267 = por %p265, %p266
      %s269 = sadd.s32 %s268, 1
      %p272 = scmp.eq.s32.totalorder %s24, 1
      %p273 = scmp.ne.s32.totalorder %s268, %s270
      %p274 = scmp.eq.s32.totalorder %s24, 0
      %p275 = por %p273, %p274
      %p276 = scmp.ne.s32.totalorder %s268, %s270
      %p277 = scmp.eq.s32.totalorder %s29, 1
      %p278 = por %p276, %p277
      %p279 = scmp.ne.s32.totalorder %s270, %s271
      %p280 = scmp.eq.s32.totalorder %s29, 0
      %p281 = por %p279, %p280
      %p282 = scmp.ne.s32.totalorder %s270, %s271
      %p283 = scmp.eq.s32.totalorder %s30, 1
      %p284 = por %p282, %p283
      %p286 = scmp.ne.s32.totalorder %s271, %s285
      %p287 = scmp.eq.s32.totalorder %s30, 0
      %p288 = por %p286, %p287
      %s290 = sadd.s32 %s289, 1
      %p293 = scmp.eq.s32.totalorder %s24, 1
      %p294 = scmp.ne.s32.totalorder %s289, %s291
      %p295 = scmp.eq.s32.totalorder %s24, 0
      %p296 = por %p294, %p295
      %p297 = scmp.ne.s32.totalorder %s289, %s291
      %p298 = scmp.eq.s32.totalorder %s29, 1
      %p299 = por %p297, %p298
      %p300 = scmp.ne.s32.totalorder %s291, %s292
      %p301 = scmp.eq.s32.totalorder %s29, 0
      %p302 = por %p300, %p301
      %p303 = scmp.ne.s32.totalorder %s291, %s292
      %p304 = scmp.eq.s32.totalorder %s30, 1
      %p305 = por %p303, %p304
      %p307 = scmp.ne.s32.totalorder %s292, %s306
      %p308 = scmp.eq.s32.totalorder %s30, 0
      %p309 = por %p307, %p308
      %s311 = sadd.s32 %s310, 1
      %p314 = scmp.eq.s32.totalorder %s24, 1
      %p315 = scmp.ne.s32.totalorder %s310, %s312
      %p316 = scmp.eq.s32.totalorder %s24, 0
      %p317 = por %p315, %p316
      %p318 = scmp.ne.s32.totalorder %s310, %s312
      %p319 = scmp.eq.s32.totalorder %s29, 1
      %p320 = por %p318, %p319
      %p321 = scmp.ne.s32.totalorder %s312, %s313
      %p322 = scmp.eq.s32.totalorder %s29, 0
      %p323 = por %p321, %p322
      %p324 = scmp.ne.s32.totalorder %s312, %s313
      %p325 = scmp.eq.s32.totalorder %s30, 1
      %p326 = por %p324, %p325
      %p328 = scmp.ne.s32.totalorder %s313, %s327
      %p329 = scmp.eq.s32.totalorder %s30, 0
      %p330 = por %p328, %p329
      %s332 = sadd.s32 %s331, 1
      %p335 = scmp.eq.s32.totalorder %s24, 1
      %p336 = scmp.ne.s32.totalorder %s331, %s333
      %p337 = scmp.eq.s32.totalorder %s24, 0
      %p338 = por %p336, %p337
      %p339 = scmp.ne.s32.totalorder %s331, %s333
      %p340 = scmp.eq.s32.totalorder %s29, 1
      %p341 = por %p339, %p340
      %p342 = scmp.ne.s32.totalorder %s333, %s334
      %p343 = scmp.eq.s32.totalorder %s29, 0
      %p344 = por %p342, %p343
      %p345 = scmp.ne.s32.totalorder %s333, %s334
      %p346 = scmp.eq.s32.totalorder %s30, 1
      %p347 = por %p345, %p346
      %p349 = scmp.ne.s32.totalorder %s334, %s348
      %p350 = scmp.eq.s32.totalorder %s30, 0
      %p351 = por %p349, %p350
      %s352 = ssub.s32 %s24, %s31
      %p353 = scmp.eq.s32.totalorder %s352, 0
      %s355 = sadd.s32 %s354, 1
      %s356 = scalar_select %p353, %s354, %s355
      %p359 = pneg %p353
      %p360 = scmp.eq.s32.totalorder %s24, 1
      %p361 = por %p359, %p360
      %p362 = scmp.ne.s32.totalorder %s354, %s357
      %p363 = scmp.eq.s32.totalorder %s24, 0
      %p364 = por %p362, %p363
      %p365 = scmp.ne.s32.totalorder %s354, %s357
      %p366 = scmp.eq.s32.totalorder %s29, 1
      %p367 = por %p365, %p366
      %p368 = scmp.ne.s32.totalorder %s357, %s358
      %p369 = scmp.eq.s32.totalorder %s29, 0
      %p370 = por %p368, %p369
      %p371 = scmp.ne.s32.totalorder %s357, %s358
      %p372 = scmp.eq.s32.totalorder %s30, 1
      %p373 = por %p371, %p372
      %p375 = scmp.ne.s32.totalorder %s358, %s374
      %p376 = scmp.eq.s32.totalorder %s30, 0
      %p377 = por %p375, %p376
      %p378 = scmp.le.s32.totalorder 1, %s24
      %p379 = scmp.lt.s32.totalorder %s24, 3
      %p380 = pnand %p378, %p379
      %p381 = pneg %p380
      // Predicated region
      $region9: #{tcn_forward.1} parent=5 // pred_check
        _
      $region10: #{tcn_forward.1} parent=5 // pred_check_branch
        %383 = sbr.rel (%p380) target = $region12
      $region11: #{tcn_forward.1} parent=5 // pred_region
        %s384 = ssub.s32 %s24, 1
        // Predicated region
        $region13: #{tcn_forward.1} parent=11 // pred_check
          %p385 = pneg %p71
        $region14: #{tcn_forward.1} parent=11 // pred_check_branch
          %387 = sbr.rel (%p385) target = $region16
        $region15: #{tcn_forward.1} parent=11 // pred_region
          _
        $region16: #{tcn_forward.1} parent=11 // pred_fallthru
          _
        // Predicated region
        $region17: #{tcn_forward.1} parent=11 // pred_check
          %p388 = pneg %p92
        $region18: #{tcn_forward.1} parent=11 // pred_check_branch
          %390 = sbr.rel (%p388) target = $region20
        $region19: #{tcn_forward.1} parent=11 // pred_region
          _
        $region20: #{tcn_forward.1} parent=11 // pred_fallthru
          _
        // Predicated region
        $region21: #{tcn_forward.1} parent=11 // pred_check
          %p391 = pneg %p113
        $region22: #{tcn_forward.1} parent=11 // pred_check_branch
          %393 = sbr.rel (%p391) target = $region24
        $region23: #{tcn_forward.1} parent=11 // pred_region
          _
        $region24: #{tcn_forward.1} parent=11 // pred_fallthru
          _
        // Predicated region
        $region25: #{tcn_forward.1} parent=11 // pred_check
          %p394 = pneg %p134
        $region26: #{tcn_forward.1} parent=11 // pred_check_branch
          %396 = sbr.rel (%p394) target = $region28
        $region27: #{tcn_forward.1} parent=11 // pred_region
          _
        $region28: #{tcn_forward.1} parent=11 // pred_fallthru
          _
        // Predicated region
        $region29: #{tcn_forward.1} parent=11 // pred_check
          %p397 = pneg %p155
        $region30: #{tcn_forward.1} parent=11 // pred_check_branch
          %399 = sbr.rel (%p397) target = $region32
        $region31: #{tcn_forward.1} parent=11 // pred_region
          _
        $region32: #{tcn_forward.1} parent=11 // pred_fallthru
          _
        // Predicated region
        $region33: #{tcn_forward.1} parent=11 // pred_check
          %p400 = pneg %p176
        $region34: #{tcn_forward.1} parent=11 // pred_check_branch
          %402 = sbr.rel (%p400) target = $region36
        $region35: #{tcn_forward.1} parent=11 // pred_region
          _
        $region36: #{tcn_forward.1} parent=11 // pred_fallthru
          _
        // Predicated region
        $region37: #{tcn_forward.1} parent=11 // pred_check
          %p403 = pneg %p197
        $region38: #{tcn_forward.1} parent=11 // pred_check_branch
          %405 = sbr.rel (%p403) target = $region40
        $region39: #{tcn_forward.1} parent=11 // pred_region
          _
        $region40: #{tcn_forward.1} parent=11 // pred_fallthru
          _
        // Predicated region
        $region41: #{tcn_forward.1} parent=11 // pred_check
          %p406 = pneg %p218
        $region42: #{tcn_forward.1} parent=11 // pred_check_branch
          %408 = sbr.rel (%p406) target = $region44
        $region43: #{tcn_forward.1} parent=11 // pred_region
          _
        $region44: #{tcn_forward.1} parent=11 // pred_fallthru
          _
        // Predicated region
        $region45: #{tcn_forward.1} parent=11 // pred_check
          %p409 = pneg %p239
        $region46: #{tcn_forward.1} parent=11 // pred_check_branch
          %411 = sbr.rel (%p409) target = $region48
        $region47: #{tcn_forward.1} parent=11 // pred_region
          _
        $region48: #{tcn_forward.1} parent=11 // pred_fallthru
          _
        // Predicated region
        $region49: #{tcn_forward.1} parent=11 // pred_check
          %p412 = pneg %p260
        $region50: #{tcn_forward.1} parent=11 // pred_check_branch
          %414 = sbr.rel (%p412) target = $region52
        $region51: #{tcn_forward.1} parent=11 // pred_region
          _
        $region52: #{tcn_forward.1} parent=11 // pred_fallthru
          _
        // Predicated region
        $region53: #{tcn_forward.1} parent=11 // pred_check
          %p415 = pneg %p281
        $region54: #{tcn_forward.1} parent=11 // pred_check_branch
          %417 = sbr.rel (%p415) target = $region56
        $region55: #{tcn_forward.1} parent=11 // pred_region
          _
        $region56: #{tcn_forward.1} parent=11 // pred_fallthru
          _
        // Predicated region
        $region57: #{tcn_forward.1} parent=11 // pred_check
          %p418 = pneg %p302
        $region58: #{tcn_forward.1} parent=11 // pred_check_branch
          %420 = sbr.rel (%p418) target = $region60
        $region59: #{tcn_forward.1} parent=11 // pred_region
          _
        $region60: #{tcn_forward.1} parent=11 // pred_fallthru
          _
        // Predicated region
        $region61: #{tcn_forward.1} parent=11 // pred_check
          %p421 = pneg %p323
        $region62: #{tcn_forward.1} parent=11 // pred_check_branch
          %423 = sbr.rel (%p421) target = $region64
        $region63: #{tcn_forward.1} parent=11 // pred_region
          _
        $region64: #{tcn_forward.1} parent=11 // pred_fallthru
          _
        // Predicated region
        $region65: #{tcn_forward.1} parent=11 // pred_check
          %p424 = pneg %p344
        $region66: #{tcn_forward.1} parent=11 // pred_check_branch
          %426 = sbr.rel (%p424) target = $region68
        $region67: #{tcn_forward.1} parent=11 // pred_region
          _
        $region68: #{tcn_forward.1} parent=11 // pred_fallthru
          _
      $region12: #{tcn_forward.1} parent=5 // pred_fallthru
        _
      %p427 = scmp.lt.s32.totalorder %s24, 2
      // Predicated region
      $region69: #{tcn_forward.1} parent=5 // pred_check
        %p428 = pneg %p427
      $region70: #{tcn_forward.1} parent=5 // pred_check_branch
        %430 = sbr.rel (%p428) target = $region72
      $region71: #{tcn_forward.1} parent=5 // pred_region
        // Predicated region
        $region73: #{tcn_forward.1} parent=71 // pred_check
          %p431 = pneg %p44
        $region74: #{tcn_forward.1} parent=71 // pred_check_branch
          %433 = sbr.rel (%p431) target = $region76
        $region75: #{tcn_forward.1} parent=71 // pred_region
          %p434 = scmp.lt.s32.totalorder %s24, 1
          %s435 = scalar_select %p434, %s24, 1
          %s436 = smul.addr %s435, 8
          %s437 = scalar_lea.vmem %s0, %s436
        $region76: #{tcn_forward.1} parent=71 // pred_fallthru
          _
      $region72: #{tcn_forward.1} parent=5 // pred_fallthru
        _
      %p438 = scmp.le.s32.totalorder 1, %s24
      %p439 = scmp.lt.s32.totalorder %s24, 3
      %p440 = pnand %p438, %p439
      %p441 = pneg %p440
      // Predicated region
      $region77: #{tcn_forward.1} parent=5 // pred_check
        _
      $region78: #{tcn_forward.1} parent=5 // pred_check_branch
        %443 = sbr.rel (%p440) target = $region80
      $region79: #{tcn_forward.1} parent=5 // pred_region
        %s444 = ssub.s32 %s24, 1
        %p445 = scmp.lt.s32.totalorder %s29, 1
        %s446 = scalar_select %p445, %s29, 1
        %s447 = smul.addr %s446, 8
        %s448 = scalar_lea.vmem %s0, %s447
        %p449 = pneg %p50
        %p450 = pneg %p47
        %p451 = pneg %p71
        %p452 = pneg %p68
        %p453 = pneg %p92
        %p454 = pneg %p89
        %p455 = pneg %p113
        %p456 = pneg %p110
        %p457 = pneg %p134
        %p458 = pneg %p131
        %p459 = pneg %p155
        %p460 = pneg %p152
        %p461 = pneg %p176
        %p462 = pneg %p173
        %p463 = pneg %p197
        %p464 = pneg %p194
        %p465 = pneg %p218
        %p466 = pneg %p215
        %p467 = pneg %p239
        %p468 = pneg %p236
        %p469 = pneg %p260
        %p470 = pneg %p257
        %p471 = pneg %p281
        %p472 = pneg %p278
        %p473 = pneg %p302
        %p474 = pneg %p299
        %p475 = pneg %p323
        %p476 = pneg %p320
        %p477 = pneg %p344
        %p478 = pneg %p341
        %p479 = pneg %p370
        %p480 = pneg %p367
        %s481 = sand.u32 %s357, 1
        %s482 = scalar_lea.sflag [#allocation3], %s481
        %s483 = sand.u32 %s357, 1
        %s484 = scalar_lea.vmem [#allocation2], %s483
        %p485 = scmp.lt.s32.totalorder %s29, 1
        %s486 = scalar_select %p485, %s29, 1
        %s487 = smul.addr %s486, 8
        %s488 = scalar_lea.vmem %s0, %s487
        %v490 = vlaneseq
        %v491 = vshrl.u32 %v490, 7
        %v492 = vand.u32 %v491, 7
        %vm493 = vcmp.ge.s32.totalorder %v492, 1
        %vm494 = vcmp.ge.s32.totalorder %v492, 2
        %v495 = vld [vmem:[%s488] sm:$0xff]
        %v496 = vrot.slane %v495, 7
        %v497 = vsel %vm493, 1, 0
        %vm498 = vcmp.eq.s32.totalorder %v497, 1
        %v499 = vsel %vm498, %v496, 0.0
        %v500 = vpack.c.bf16 %v499, %v499
        %v501 = vld [vmem:[%s1] sm:$0x3]
        %v502 = vpack.c.bf16 %v495, %v495
        %s503 = scalar_lea.vmem %s1, 2
        %v504 = vld [vmem:[%s503] sm:$0x3]
        %vm505 = vcmask 31744
        %v507 = vsel %vm505, %v502, 0
        %vm509 = vcmask 1041408
        %v511 = vsel %vm509, %v504, 0
        %513 = vmatpush.bf16.msra.mxu0 0
        %514 = vmatpush.bf16.msra.mxu0 0
        %515 = vmatpush.bf16.msra.mxu0 0
        %516 = vmatpush.bf16.msra.mxu0 0
        %517 = vmatpush.bf16.msra.mxu0 0
        %518 = vmatpush.bf16.msra.mxu0 0
        %519 = vmatpush.bf16.msra.mxu0 0
        %520 = vmatpush.bf16.msra.mxu0 %v511
        %521 = vmatmul.bf16.gmra.mxu0 %v507
        %v522 = vpop.f32.mrf.mxu0
        %v523 = vadd.f32 0.0, %v522
        %v524 = vpop.f32.mrf.mxu0
        %525 = vdwg.mxu0
        %v527 = vsel %vm505, %v500, 0
        %v530 = vsel %vm509, %v501, 0
        %532 = vmatpush.bf16.msra.mxu0 0
        %533 = vmatpush.bf16.msra.mxu0 0
        %534 = vmatpush.bf16.msra.mxu0 0
        %535 = vmatpush.bf16.msra.mxu0 0
        %536 = vmatpush.bf16.msra.mxu0 0
        %537 = vmatpush.bf16.msra.mxu0 0
        %538 = vmatpush.bf16.msra.mxu0 0
        %539 = vmatpush.bf16.msra.mxu0 %v530
        %540 = vmatmul.bf16.gmra.mxu0 %v527
        %v541 = vpop.f32.mrf.mxu0
        %v542 = vadd.f32 %v523, %v541
        %v543 = vpop.f32.mrf.mxu0
        %544 = vdwg.mxu0
        %v545 = vld [vmem:[%s2] sm:$0x1]
        %v547 = vperm.slane %v545, 0
        %v549 = vadd.f32 %v542, %v547
        %v550 = vmax.f32 %v549, 0.0
        %v551 = vrot.slane %v550, 7
        %v552 = vsel %vm498, %v551, 0.0
        %v553 = vpack.c.bf16 %v552, %v552
        %v554 = vld [vmem:[%s3] sm:$0xf]
        %v555 = vld [vmem:[%s3 + $0x4] sm:$0xf]
        %v556 = vpack.c.bf16 %v550, %v550
        %s557 = scalar_lea.vmem %s3, 8
        %v558 = vld [vmem:[%s557] sm:$0xf]
        %v559 = vld [vmem:[%s557 + $0x4] sm:$0xf]
        %v562 = vunpack.c.l.b16 %v558
        %v563 = vunpack.c.l.b16 %v559
        %v564 = vpack.c.b16 %v563, %v562
        %vm566 = vcmask 130048
        %v568 = vsel %vm566, %v556, 0
        %570 = vmatpush.bf16.msra.mxu0 0
        %571 = vmatpush.bf16.msra.mxu0 0
        %572 = vmatpush.bf16.msra.mxu0 0
        %573 = vmatpush.bf16.msra.mxu0 0
        %574 = vmatpush.bf16.msra.mxu0 0
        %575 = vmatpush.bf16.msra.mxu0 0
        %576 = vmatpush.bf16.msra.mxu0 0
        %577 = vmatpush.bf16.msra.mxu0 %v564
        %578 = vmatmul.bf16.gmra.mxu0 %v568
        %v579 = vpop.f32.mrf.mxu0
        %v580 = vadd.f32 0.0, %v579
        %v581 = vpop.f32.mrf.mxu0
        %582 = vdwg.mxu0
        %v585 = vunpack.c.l.b16 %v554
        %v586 = vunpack.c.l.b16 %v555
        %v587 = vpack.c.b16 %v586, %v585
        %v590 = vsel %vm566, %v553, 0
        %592 = vmatpush.bf16.msra.mxu0 0
        %593 = vmatpush.bf16.msra.mxu0 0
        %594 = vmatpush.bf16.msra.mxu0 0
        %595 = vmatpush.bf16.msra.mxu0 0
        %596 = vmatpush.bf16.msra.mxu0 0
        %597 = vmatpush.bf16.msra.mxu0 0
        %598 = vmatpush.bf16.msra.mxu0 0
        %599 = vmatpush.bf16.msra.mxu0 %v587
        %600 = vmatmul.bf16.gmra.mxu0 %v590
        %v601 = vpop.f32.mrf.mxu0
        %v602 = vadd.f32 %v580, %v601
        %v603 = vpop.f32.mrf.mxu0
        %604 = vdwg.mxu0
        %v605 = vld [vmem:[%s4] sm:$0x1]
        %v607 = vperm.slane %v605, 0
        %v609 = vadd.f32 %v602, %v607
        %v610 = vmax.f32 %v609, 0.0
        %v611 = vld [vmem:[%s5] sm:$0x3]
        %v612 = vld [vmem:[%s6] sm:$0x1]
        %v614 = vperm.slane %v612, 0
        %v617 = vsel %vm509, %v611, 0
        %619 = vmatpush.bf16.msra.mxu0 0
        %620 = vmatpush.bf16.msra.mxu0 0
        %621 = vmatpush.bf16.msra.mxu0 0
        %622 = vmatpush.bf16.msra.mxu0 0
        %623 = vmatpush.bf16.msra.mxu0 0
        %624 = vmatpush.bf16.msra.mxu0 0
        %625 = vmatpush.bf16.msra.mxu0 0
        %626 = vmatpush.bf16.msra.mxu0 %v617
        %627 = vmatmul.bf16.gmra.mxu0 %v507
        %v628 = vpop.f32.mrf.mxu0
        %v629 = vadd.f32 %v614, %v628
        %v630 = vpop.f32.mrf.mxu0
        %631 = vdwg.mxu0
        %v632 = vadd.f32 %v610, %v629
        %v633 = vmax.f32 %v632, 0.0
        %v634 = vrot.slane %v633, 6
        %v635 = vsel %vm494, 1, 0
        %vm636 = vcmp.eq.s32.totalorder %v635, 1
        %v637 = vsel %vm636, %v634, 0.0
        %v638 = vpack.c.bf16 %v637, %v637
        %v639 = vld [vmem:[%s7] sm:$0xf]
        %v640 = vld [vmem:[%s7 + $0x4] sm:$0xf]
        %v641 = vpack.c.bf16 %v633, %v633
        %s642 = scalar_lea.vmem %s7, 8
        %v643 = vld [vmem:[%s642] sm:$0xf]
        %v644 = vld [vmem:[%s642 + $0x4] sm:$0xf]
        %v647 = vunpack.c.l.b16 %v643
        %v648 = vunpack.c.l.b16 %v644
        %v649 = vpack.c.b16 %v648, %v647
        %v652 = vsel %vm566, %v641, 0
        %654 = vmatpush.bf16.msra.mxu0 0
        %655 = vmatpush.bf16.msra.mxu0 0
        %656 = vmatpush.bf16.msra.mxu0 0
        %657 = vmatpush.bf16.msra.mxu0 0
        %658 = vmatpush.bf16.msra.mxu0 0
        %659 = vmatpush.bf16.msra.mxu0 0
        %660 = vmatpush.bf16.msra.mxu0 0
        %661 = vmatpush.bf16.msra.mxu0 %v649
        %662 = vmatmul.bf16.gmra.mxu0 %v652
        %v663 = vpop.f32.mrf.mxu0
        %v664 = vadd.f32 0.0, %v663
        %v665 = vpop.f32.mrf.mxu0
        %666 = vdwg.mxu0
        %v669 = vunpack.c.l.b16 %v639
        %v670 = vunpack.c.l.b16 %v640
        %v671 = vpack.c.b16 %v670, %v669
        %v674 = vsel %vm566, %v638, 0
        %676 = vmatpush.bf16.msra.mxu0 0
        %677 = vmatpush.bf16.msra.mxu0 0
        %678 = vmatpush.bf16.msra.mxu0 0
        %679 = vmatpush.bf16.msra.mxu0 0
        %680 = vmatpush.bf16.msra.mxu0 0
        %681 = vmatpush.bf16.msra.mxu0 0
        %682 = vmatpush.bf16.msra.mxu0 0
        %683 = vmatpush.bf16.msra.mxu0 %v671
        %684 = vmatmul.bf16.gmra.mxu0 %v674
        %v685 = vpop.f32.mrf.mxu0
        %v686 = vadd.f32 %v664, %v685
        %v687 = vpop.f32.mrf.mxu0
        %688 = vdwg.mxu0
        %v689 = vld [vmem:[%s8] sm:$0x1]
        %v691 = vperm.slane %v689, 0
        %v693 = vadd.f32 %v686, %v691
        %v694 = vmax.f32 %v693, 0.0
        %v695 = vrot.slane %v694, 6
        %v696 = vsel %vm636, %v695, 0.0
        %v697 = vpack.c.bf16 %v696, %v696
        %v698 = vld [vmem:[%s9] sm:$0xf]
        %v699 = vld [vmem:[%s9 + $0x4] sm:$0xf]
        %v700 = vld [vmem:[%s9 + $0x8] sm:$0xf]
        %v701 = vld [vmem:[%s9 + $0xc] sm:$0xf]
        %v702 = vpack.c.bf16 %v694, %v694
        %s703 = scalar_lea.vmem %s9, 16
        %v704 = vld [vmem:[%s703] sm:$0xf]
        %v705 = vld [vmem:[%s703 + $0x4] sm:$0xf]
        %v706 = vld [vmem:[%s703 + $0x8] sm:$0xf]
        %v707 = vld [vmem:[%s703 + $0xc] sm:$0xf]
        %v712 = vunpack.c.l.b16 %v704
        %v713 = vunpack.c.l.b16 %v705
        %v714 = vunpack.c.l.b16 %v706
        %v715 = vunpack.c.l.b16 %v707
        %v716 = vpack.c.b16 %v713, %v712
        %v717 = vpack.c.b16 %v715, %v714
        %vm720 = vcmask 261120
        %v722 = vsel %vm720, %v702, 0
        %724 = vmatpush.bf16.msra.mxu0 0
        %725 = vmatpush.bf16.msra.mxu0 0
        %726 = vmatpush.bf16.msra.mxu0 0
        %727 = vmatpush.bf16.msra.mxu0 0
        %728 = vmatpush.bf16.msra.mxu0 0
        %729 = vmatpush.bf16.msra.mxu0 0
        %730 = vmatpush.bf16.msra.mxu0 %v717
        %731 = vmatpush.bf16.msra.mxu0 %v716
        %732 = vmatmul.bf16.gmra.mxu0 %v722
        %v733 = vpop.f32.mrf.mxu0
        %v734 = vadd.f32 0.0, %v733
        %v735 = vpop.f32.mrf.mxu0
        %736 = vdwg.mxu0
        %v741 = vunpack.c.l.b16 %v698
        %v742 = vunpack.c.l.b16 %v699
        %v743 = vunpack.c.l.b16 %v700
        %v744 = vunpack.c.l.b16 %v701
        %v745 = vpack.c.b16 %v742, %v741
        %v746 = vpack.c.b16 %v744, %v743
        %v750 = vsel %vm720, %v697, 0
        %752 = vmatpush.bf16.msra.mxu0 0
        %753 = vmatpush.bf16.msra.mxu0 0
        %754 = vmatpush.bf16.msra.mxu0 0
        %755 = vmatpush.bf16.msra.mxu0 0
        %756 = vmatpush.bf16.msra.mxu0 0
        %757 = vmatpush.bf16.msra.mxu0 0
        %758 = vmatpush.bf16.msra.mxu0 %v746
        %759 = vmatpush.bf16.msra.mxu0 %v745
        %760 = vmatmul.bf16.gmra.mxu0 %v750
        %v761 = vpop.f32.mrf.mxu0
        %v762 = vadd.f32 %v734, %v761
        %v763 = vpop.f32.mrf.mxu0
        %764 = vdwg.mxu0
        %v765 = vld [vmem:[%s10] sm:$0x1]
        %v767 = vperm.slane %v765, 0
        %v769 = vadd.f32 %v762, %v767
        %v770 = vmax.f32 %v769, 0.0
        %v771 = vld [vmem:[%s11] sm:$0xf]
        %v772 = vld [vmem:[%s11 + $0x4] sm:$0xf]
        %v773 = vld [vmem:[%s12] sm:$0x1]
        %v775 = vperm.slane %v773, 0
        %v779 = vunpack.c.l.b16 %v771
        %v780 = vunpack.c.l.b16 %v772
        %v781 = vpack.c.b16 %v780, %v779
        %783 = vmatpush.bf16.msra.mxu0 0
        %784 = vmatpush.bf16.msra.mxu0 0
        %785 = vmatpush.bf16.msra.mxu0 0
        %786 = vmatpush.bf16.msra.mxu0 0
        %787 = vmatpush.bf16.msra.mxu0 0
        %788 = vmatpush.bf16.msra.mxu0 0
        %789 = vmatpush.bf16.msra.mxu0 0
        %790 = vmatpush.bf16.msra.mxu0 %v781
        %791 = vmatmul.bf16.gmra.mxu0 %v652
        %v792 = vpop.f32.mrf.mxu0
        %v793 = vadd.f32 %v775, %v792
        %v794 = vpop.f32.mrf.mxu0
        %795 = vdwg.mxu0
        %v796 = vadd.f32 %v770, %v793
        %v797 = vmax.f32 %v796, 0.0
        %v798 = vpack.c.bf16 %v797, %v797
        %v799 = vld [vmem:[%s13] sm:$0xf]
        %v800 = vld [vmem:[%s13 + $0x4] sm:$0xf]
        %v801 = vld [vmem:[%s13 + $0x8] sm:$0xf]
        %v802 = vld [vmem:[%s13 + $0xc] sm:$0xf]
        %v803 = vld [vmem:[%s14] sm:$0x1]
        %v805 = vshrl.u32 %v798, 16
        %v807 = vrot.slane %v805, 3
        %v812 = vunpack.c.l.b16 %v799
        %v813 = vunpack.c.l.b16 %v800
        %v814 = vunpack.c.l.b16 %v801
        %v815 = vunpack.c.l.b16 %v802
        %v816 = vpack.c.b16 %v813, %v812
        %v817 = vpack.c.b16 %v815, %v814
        %v821 = vsel %vm720, %v807, 0
        %823 = vmatpush.bf16.msra.mxu0 0
        %824 = vmatpush.bf16.msra.mxu0 0
        %825 = vmatpush.bf16.msra.mxu0 0
        %826 = vmatpush.bf16.msra.mxu0 0
        %827 = vmatpush.bf16.msra.mxu0 0
        %828 = vmatpush.bf16.msra.mxu0 0
        %829 = vmatpush.bf16.msra.mxu0 %v817
        %830 = vmatpush.bf16.msra.mxu0 %v816
        %831 = vmatmul.bf16.gmra.mxu0 %v821
        %v832 = vpop.f32.mrf.mxu0
        %v833 = vadd.f32 %v803, %v832
        %v834 = vpop.f32.mrf.mxu0
        %835 = vdwg.mxu0
        %vm836 = vcmask 16384
        %837 = vst.msk [vmem:[%s484] sm:$0x1] %vm836, %v833
        %s838 = sand.u32 %s357, 1
        %s839 = scalar_lea.sflag [#allocation3], %s838
        %s840 = sand.u32 %s357, 1
        %s841 = scalar_lea.vmem [#allocation2], %s840
        // Predicated region
        $region81: #{tcn_forward.1} parent=79 // pred_check
          %p842 = pneg %p367
        $region82: #{tcn_forward.1} parent=79 // pred_check_branch
          %844 = sbr.rel (%p842) target = $region84
        $region83: #{tcn_forward.1} parent=79 // pred_region
          %846 = vsyncadd %s839, 0
          %s847 = scalar_lea.hbm %s15, %s29
          %s849 = sshll.u32 %s841, 4
          %s850 = int_to_ptr.vmem [resolvable:$true] %s849
          %s851 = sshll.u32 %s847, 4
          %s852 = int_to_ptr.hbm [resolvable:$true] %s851
          %854 = dma.vmem_to_hbm [thread:$0]  %s850, 16, %s852, %s839
        $region84: #{tcn_forward.1} parent=79 // pred_fallthru
          _
      $region80: #{tcn_forward.1} parent=5 // pred_fallthru
        _
      %p855 = scmp.le.s32.totalorder 2, %s24
      // Predicated region
      $region85: #{tcn_forward.1} parent=5 // pred_check
        %p856 = pneg %p855
      $region86: #{tcn_forward.1} parent=5 // pred_check_branch
        %858 = sbr.rel (%p856) target = $region88
      $region87: #{tcn_forward.1} parent=5 // pred_region
        %s859 = ssub.s32 %s24, 2
        // Predicated region
        $region89: #{tcn_forward.1} parent=87 // pred_check
          %p860 = pneg %p373
        $region90: #{tcn_forward.1} parent=87 // pred_check_branch
          %862 = sbr.rel (%p860) target = $region92
        $region91: #{tcn_forward.1} parent=87 // pred_region
          %s863 = sand.u32 %s358, 1
          %s864 = scalar_lea.sflag [#allocation3], %s863
          %s865 = sand.u32 %s358, 1
          %s866 = scalar_lea.vmem [#allocation2], %s865
          %868 = dma.done %s864, 16
        $region92: #{tcn_forward.1} parent=87 // pred_fallthru
          _
      $region88: #{tcn_forward.1} parent=5 // pred_fallthru
        _
    $region6: #{tcn_forward.1} parent=1 // loop_footer
      %s28 = sadd.s32 1, %s24
    $region7: #{tcn_forward.1} parent=1 // loop_footer_branch
      %23 = sbr.rel target = $region3
    $region8: #{tcn_forward.1} parent=1 // loop_exit
      _
    %869 = vsyncpa [#allocation3], 1
    %s870 = scalar_lea.sflag [#allocation3], 1
    %871 = vsyncpa %s870, 1

</llo_original>
